<compile_context>
chip_gen: v6e
topology: v6e:2x2x1
jax: 0.10.0
libtpu: 0.0.40
codegen_flags: <defaults>
</compile_context>

<pallas_src>
import functools

import jax
import jax.numpy as jnp
from jax.experimental import pallas as pl
from jax.experimental.pallas import tpu as pltpu


def _round_up(x, m):
    return (x + m - 1) // m * m


def _ntxent_row_block_kernel(x_ref, o_ref, *, n_valid, n_pad, block_rows):
    # x_ref: (2*n_pad, d_pad) features, already L2-normalized (cosine path) and
    #        scaled by 1/sqrt(T) in the wrapper, resident in VMEM across the grid.
    # o_ref: (1, 8, 128) per-block partial-sum tile (filled with one scalar).
    q = pl.program_id(0)
    two_n_pad = 2 * n_pad

    x_all = x_ref[...]                                      # (2*n_pad, d_pad)

    # this block's query rows (aligned dynamic sublane slice of the resident block)
    row0 = pl.multiple_of(q * block_rows, 8)
    xq = x_ref[pl.ds(row0, block_rows), :]                  # (block_rows, d_pad)

    # partner rows: global row r pairs with r +/- n_pad (zjs half <-> zis half)
    p0 = jnp.where(row0 < n_pad, row0 + n_pad, row0 - n_pad)
    xp = x_ref[pl.ds(pl.multiple_of(p0, 8), block_rows), :]

    # (block_rows, 2*n_pad) tile of sim/T: contract the last dim of both
    # operands -- no x.T materialization / XLU transpose.
    s = jax.lax.dot_general(
        xq, x_all,
        dimension_numbers=(((1,), (1,)), ((), ())),
        preferred_element_type=jnp.float32,
    )

    # positive logit per row: row-wise dot with the partner row
    # (replaces the (2N,2N) pos_mask select-and-reduce of the old kernel).
    pos = jnp.sum(xq * xp, axis=-1, keepdims=True)          # (block_rows, 1)

    # mask the self-similarity column and the zero-padded columns; masks are
    # built from a (TQ,1) and a (1,2Np) iota and broadcast (no full int32 matrices).
    row_g = row0 + jax.lax.broadcasted_iota(jnp.int32, (block_rows, 1), 0)
    col = jax.lax.broadcasted_iota(jnp.int32, (1, two_n_pad), 1)
    col_is_pad = ((col >= n_valid) & (col < n_pad)) | (col >= n_pad + n_valid)
    s = jnp.where((col == row_g) | col_is_pad, jnp.float32(-1e30), s)

    # exact row-wise logsumexp over positive + negatives (= all valid j != i)
    m = jnp.max(s, axis=-1, keepdims=True)
    lse = m + jnp.log(jnp.sum(jnp.exp(s - m), axis=-1, keepdims=True))

    # padded rows contribute nothing to the loss
    row_is_valid = (row_g < n_valid) | ((row_g >= n_pad) & (row_g < n_pad + n_valid))
    contrib = jnp.where(row_is_valid, lse - pos, jnp.float32(0.0))

    o_ref[...] = jnp.full(o_ref.shape, jnp.sum(contrib), dtype=jnp.float32)


def ntxent_loss_pallas(zis, zjs, temperature=0.5, use_cosine_similarity=True,
                       block_rows=256):
    n, d = zis.shape
    assert zjs.shape == (n, d)

    # representations = cat([zjs, zis]) -- same order as the PyTorch module.
    reps = jnp.concatenate([zjs, zis], axis=0).astype(jnp.float32)   # (2n, d)

    # Fold cosine normalization and 1/sqrt(T) into the (2N, D) features so the
    # matmul directly produces sim/T (moves the scale off the (2N)^2 tensor).
    inv_sqrt_t = float(temperature) ** -0.5
    if use_cosine_similarity:
        # NOTE: clamps each row norm to 1e-8; torch.nn.CosineSimilarity clamps
        # the *product* of norms -- only differs for near-zero feature rows.
        ssq = jnp.sum(reps * reps, axis=-1, keepdims=True)
        reps = reps * (jax.lax.rsqrt(jnp.maximum(ssq, jnp.float32(1e-16)))
                       * jnp.float32(inv_sqrt_t))
    else:
        reps = reps * jnp.float32(inv_sqrt_t)

    # Pad: each half to a multiple of the row tile (>= 8 sublanes), features to
    # a multiple of 128 lanes (zero-padding does not change any dot product).
    tq = min(int(block_rows), _round_up(n, 8))
    n_pad = _round_up(n, tq)
    d_pad = _round_up(d, 128)
    x = jnp.zeros((2 * n_pad, d_pad), jnp.float32)
    x = x.at[:n, :d].set(reps[:n])                 # zjs half
    x = x.at[n_pad:n_pad + n, :d].set(reps[n:])    # zis half

    num_blocks = (2 * n_pad) // tq
    kernel = functools.partial(_ntxent_row_block_kernel,
                               n_valid=n, n_pad=n_pad, block_rows=tq)

    out = pl.pallas_call(
        kernel,
        out_shape=jax.ShapeDtypeStruct((num_blocks, 8, 128), jnp.float32),
        grid=(num_blocks,),
        in_specs=[
            # full feature block, constant index map -> stays resident in VMEM
            pl.BlockSpec((2 * n_pad, d_pad), lambda q: (0, 0)),
        ],
        out_specs=pl.BlockSpec((1, 8, 128), lambda q: (q, 0, 0)),
        compiler_params=pltpu.CompilerParams(
            dimension_semantics=("parallel",),        # megacore on v7x
            vmem_limit_bytes=48 * 1024 * 1024,        # explicit headroom
        ),
    )(x)

    partials = out[:, 0, 0]                           # one scalar per row block
    return jnp.sum(partials) / jnp.float32(2 * n)


def ntxent_loss_ref(zis, zjs, temperature=0.5, use_cosine_similarity=True):
    """Pure-JAX reference mirroring the PyTorch module exactly."""
    n = zis.shape[0]
    reps = jnp.concatenate([zjs, zis], axis=0).astype(jnp.float32)
    if use_cosine_similarity:
        norms = jnp.maximum(jnp.linalg.norm(reps, axis=-1, keepdims=True), 1e-8)
        xn = reps / norms
        sim = jnp.matmul(xn, xn.T, precision=jax.lax.Precision.HIGHEST)
    else:
        sim = jnp.matmul(reps, reps.T, precision=jax.lax.Precision.HIGHEST)
    l_pos = jnp.diagonal(sim, offset=n)
    r_pos = jnp.diagonal(sim, offset=-n)
    positives = jnp.concatenate([l_pos, r_pos]).reshape(2 * n, 1)
    mask = ~(jnp.eye(2 * n, dtype=bool)
             | jnp.eye(2 * n, k=n, dtype=bool)
             | jnp.eye(2 * n, k=-n, dtype=bool))
    negatives = sim[mask].reshape(2 * n, -1)
    logits = jnp.concatenate([positives, negatives], axis=1) / temperature
    lse = jax.scipy.special.logsumexp(logits, axis=-1)
    loss = jnp.sum(lse - logits[:, 0])
    return loss / (2 * n)


if __name__ == "__main__":
    key = jax.random.PRNGKey(0)
    k1, k2, k3, k4 = jax.random.split(key, 4)

    # primary test: batch=4, feat=32, cosine similarity, T=0.5
    zis = jax.random.normal(k1, (4, 32), dtype=jnp.float32)
    zjs = jax.random.normal(k2, (4, 32), dtype=jnp.float32)
    loss = jax.block_until_ready(ntxent_loss_pallas(zis, zjs, 0.5, True))
    ref = ntxent_loss_ref(zis, zjs, 0.5, True)
    assert jnp.allclose(loss, ref, rtol=1e-4, atol=1e-5), (loss, ref)

    # dot-product similarity path
    loss2 = jax.block_until_ready(ntxent_loss_pallas(zis, zjs, 0.5, False))
    ref2 = ntxent_loss_ref(zis, zjs, 0.5, False)
    assert jnp.allclose(loss2, ref2, rtol=1e-4, atol=1e-5), (loss2, ref2)

    # odd batch / feature sizes exercise the row- and lane-padding masks
    zis3 = jax.random.normal(k3, (5, 20), dtype=jnp.float32)
    zjs3 = jax.random.normal(k4, (5, 20), dtype=jnp.float32)
    loss3 = jax.block_until_ready(ntxent_loss_pallas(zis3, zjs3, 0.5, True))
    ref3 = ntxent_loss_ref(zis3, zjs3, 0.5, True)
    assert jnp.allclose(loss3, ref3, rtol=1e-4, atol=1e-5), (loss3, ref3)

    print("KERNEL_OK")
</pallas_src>

<mosaic_0001>
module attributes {stable_mosaic.version = 11 : i64} {
  func.func @_ntxent_row_block_kernel(%arg0: i32, %arg1: memref<16x128xf32, #tpu.memory_space<vmem>>, %arg2: memref<1x8x128xf32, #tpu.memory_space<vmem>>) attributes {dimension_semantics = [#tpu.dimension_semantics<parallel>], iteration_bounds = array<i64: 2>, scalar_prefetch = 0 : i64, scratch_operands = 0 : i64, tpu.core_type = #tpu.core_type<tc>, window_params = [{pipeline_mode = #tpu.pipeline_mode<synchronous>, transform_indices = @transform_0, window_bounds = array<i64: 16, 128>}, {transform_indices = @transform_1, window_bounds = array<i64: 1, 8, 128>}]} {
    %c0 = arith.constant 0 : index
    %c0_0 = arith.constant 0 : index
    %0 = vector.load %arg1[%c0, %c0_0] : memref<16x128xf32, #tpu.memory_space<vmem>>, vector<16x128xf32>
    %c8_i32 = arith.constant 8 : i32
    %1 = arith.muli %arg0, %c8_i32 : i32
    %2 = tpu.assume_multiple %1, 8 : i32
    %3 = arith.index_cast %2 : i32 to index
    %c0_1 = arith.constant 0 : index
    %4 = vector.load %arg1[%3, %c0_1] : memref<16x128xf32, #tpu.memory_space<vmem>>, vector<8x128xf32>
    %c8_i32_2 = arith.constant 8 : i32
    %5 = arith.cmpi slt, %2, %c8_i32_2 : i32
    %c8_i32_3 = arith.constant 8 : i32
    %6 = arith.addi %2, %c8_i32_3 : i32
    %c8_i32_4 = arith.constant 8 : i32
    %7 = arith.subi %2, %c8_i32_4 : i32
    %8 = arith.select %5, %6, %7 : i32
    %9 = tpu.assume_multiple %8, 8 : i32
    %10 = arith.index_cast %9 : i32 to index
    %c0_5 = arith.constant 0 : index
    %11 = vector.load %arg1[%10, %c0_5] : memref<16x128xf32, #tpu.memory_space<vmem>>, vector<8x128xf32>
    %cst = arith.constant dense<0.000000e+00> : vector<8x16xf32>
    %12 = tpu.matmul %4, %0, %cst {dimension_numbers = #tpu.dot_dimension_numbers<[1], [1], [0], [0], [0, 0, 1, 0], [], []>} : vector<8x128xf32>, vector<16x128xf32>, vector<8x16xf32> -> vector<8x16xf32>
    %13 = arith.mulf %4, %11 : vector<8x128xf32>
    %cst_6 = arith.constant dense<0.000000e+00> : vector<8xf32>
    %14 = vector.multi_reduction <add>, %13, %cst_6 [1] : vector<8x128xf32> to vector<8xf32>
    %15 = vector.shape_cast %14 : vector<8xf32> to vector<8x1xf32>
    %16 = tpu.iota {dimensions = array<i32: 0>} : vector<8x1xi32>
    %17 = vector.broadcast %2 : i32 to vector<8x1xi32>
    %18 = arith.addi %17, %16 : vector<8x1xi32>
    %19 = tpu.iota {dimensions = array<i32: 1>} : vector<1x16xi32>
    %c4_i32 = arith.constant 4 : i32
    %20 = vector.broadcast %c4_i32 : i32 to vector<1x16xi32>
    %21 = arith.cmpi sge, %19, %20 : vector<1x16xi32>
    %c8_i32_7 = arith.constant 8 : i32
    %22 = vector.broadcast %c8_i32_7 : i32 to vector<1x16xi32>
    %23 = arith.cmpi slt, %19, %22 : vector<1x16xi32>
    %24 = arith.andi %21, %23 : vector<1x16xi1>
    %c12_i32 = arith.constant 12 : i32
    %25 = vector.broadcast %c12_i32 : i32 to vector<1x16xi32>
    %26 = arith.cmpi sge, %19, %25 : vector<1x16xi32>
    %27 = arith.ori %24, %26 : vector<1x16xi1>
    %28 = vector.broadcast %19 : vector<1x16xi32> to vector<8x16xi32>
    %29 = vector.broadcast %18 : vector<8x1xi32> to vector<8x16xi32>
    %30 = arith.cmpi eq, %28, %29 : vector<8x16xi32>
    %31 = vector.broadcast %27 : vector<1x16xi1> to vector<8x16xi1>
    %32 = arith.ori %30, %31 : vector<8x16xi1>
    %cst_8 = arith.constant -1.000000e+30 : f32
    %33 = vector.broadcast %cst_8 : f32 to vector<8x16xf32>
    %34 = arith.select %32, %33, %12 : vector<8x16xi1>, vector<8x16xf32>
    %cst_9 = arith.constant dense<0xFF800000> : vector<8xf32>
    %35 = vector.multi_reduction <maximumf>, %34, %cst_9 [1] : vector<8x16xf32> to vector<8xf32>
    %36 = vector.shape_cast %35 : vector<8xf32> to vector<8x1xf32>
    %37 = vector.broadcast %36 : vector<8x1xf32> to vector<8x16xf32>
    %38 = arith.subf %34, %37 : vector<8x16xf32>
    %39 = math.exp %38 : vector<8x16xf32>
    %cst_10 = arith.constant dense<0.000000e+00> : vector<8xf32>
    %40 = vector.multi_reduction <add>, %39, %cst_10 [1] : vector<8x16xf32> to vector<8xf32>
    %41 = vector.shape_cast %40 : vector<8xf32> to vector<8x1xf32>
    %42 = math.log %41 : vector<8x1xf32>
    %43 = arith.addf %36, %42 : vector<8x1xf32>
    %c4_i32_11 = arith.constant 4 : i32
    %44 = vector.broadcast %c4_i32_11 : i32 to vector<8x1xi32>
    %45 = arith.cmpi slt, %18, %44 : vector<8x1xi32>
    %c8_i32_12 = arith.constant 8 : i32
    %46 = vector.broadcast %c8_i32_12 : i32 to vector<8x1xi32>
    %47 = arith.cmpi sge, %18, %46 : vector<8x1xi32>
    %c12_i32_13 = arith.constant 12 : i32
    %48 = vector.broadcast %c12_i32_13 : i32 to vector<8x1xi32>
    %49 = arith.cmpi slt, %18, %48 : vector<8x1xi32>
    %50 = arith.andi %47, %49 : vector<8x1xi1>
    %51 = arith.ori %45, %50 : vector<8x1xi1>
    %52 = arith.subf %43, %15 : vector<8x1xf32>
    %cst_14 = arith.constant 0.000000e+00 : f32
    %53 = vector.broadcast %cst_14 : f32 to vector<8x1xf32>
    %54 = arith.select %51, %52, %53 : vector<8x1xi1>, vector<8x1xf32>
    %55 = vector.shape_cast %54 : vector<8x1xf32> to vector<1x8x1xf32>
    %cst_15 = arith.constant dense<0.000000e+00> : vector<1xf32>
    %56 = vector.multi_reduction <add>, %55, %cst_15 [1, 2] : vector<1x8x1xf32> to vector<1xf32>
    %57 = vector.shape_cast %56 : vector<1xf32> to vector<1x1x1xf32>
    %58 = vector.extract %57[0, 0, 0] : f32 from vector<1x1x1xf32>
    %59 = vector.broadcast %58 : f32 to vector<1x8x128xf32>
    %c0_16 = arith.constant 0 : index
    %c0_17 = arith.constant 0 : index
    %c0_18 = arith.constant 0 : index
    %60 = vector.load %arg2[%c0_16, %c0_17, %c0_18] : memref<1x8x128xf32, #tpu.memory_space<vmem>>, vector<1x8x128xf32>
    tpu.vector_store %arg2[%c0_16, %c0_17, %c0_18], %59 {strides = array<i32>} : memref<1x8x128xf32, #tpu.memory_space<vmem>>, vector<1x8x128xf32>,
    return
  }
  func.func @transform_0(%arg0: i32) -> (i32, i32) {
    %c0_i32 = arith.constant 0 : i32
    %c0_i32_0 = arith.constant 0 : i32
    %c0_i32_1 = arith.constant 0 : i32
    return %c0_i32, %c0_i32_0 : i32, i32
  }
  func.func @transform_1(%arg0: i32) -> (i32, i32, i32) {
    %c0_i32 = arith.constant 0 : i32
    %c0_i32_0 = arith.constant 0 : i32
    %c0_i32_1 = arith.constant 0 : i32
    return %arg0, %c0_i32, %c0_i32_0 : i32, i32, i32
  }
}

</mosaic_0001>

<llo_original>
// kernel: tpu_custom_call.1
$region0: #{tpu_custom_call.1}
  #allocation0 [shape = 'u32[]', space=smem, size = 0x4, offset = 0x4, fixed_abs, tag = 'smem constant byte address 0x4 - core index']
  #allocation1 [shape = 'u32[144,128]{1,0:T(1,128)}', space=vmem, size = 0x12000, scoped, tag = 'internal scratch']
  %s0 = inlined_call_operand.hbm [shape: f32[16,128], index: 0, kind: input, shape index: {}]
  %s1 = inlined_call_operand.hbm [shape: f32[2,8,128], index: 1, kind: output, shape index: {}]
  %s2 = sld [smem:[#allocation0]]
  $region41: #{tpu_custom_call.1} parent=0
    _
  %s4 = ssub.s32 1, %s2
  %s5 = scalar_select 0, %s4, %s2
  $region1: #{tpu_custom_call.1} parent=0
    #allocation2 [shape = 'u8[8192]{0}', space=vmem, size = 0x2000, scoped, tag = 'input window, operand 0, single buffered']
    #allocation3 [shape = 's32[2]{0}', space=sflag, size = 0x8, scoped, tag = 'scoped memory for tpu_custom_call.1']
    #allocation4 [shape = 's32[2]{0}', space=sflag, size = 0x8, scoped, tag = 'scoped memory for tpu_custom_call.1']
    #allocation5 [shape = 'u8[8192]{0}', space=vmem, size = 0x2000, scoped, tag = 'output window, operand 0']
    %6 = vsyncpa [#allocation3], 0
    %7 = vsyncpa [#allocation4], 0
    %s8 = scalar_lea.sflag [#allocation4], 1
    %9 = vsyncpa %s8, 0
    loop: start=0, step=1, limit=4
    $region2: #{tpu_custom_call.1} parent=1 // loop_pre_header
      _
    $region3: #{tpu_custom_call.1} parent=1 // loop_header
      %s11 = sphi 0, %s15
      %p12 = scmp.ge.s32.totalorder %s11, 4
      %s19 = sphi 0, %s19
      %s21 = sphi 0, %s19
      %s22 = sphi 0, %s21
      %s36 = sphi 0, %s22
      %s42 = sphi 0, %s44
      %s45 = sphi 0, %s42
      %s46 = sphi 0, %s45
      %s62 = sphi 0, %s46
    $region4: #{tpu_custom_call.1} parent=1 // loop_header_branch
      %14 = sbr.rel (%p12) target = $region8
    $region5: #{tpu_custom_call.1} parent=1 // loop_body
      %s16 = ssub.s32 %s11, 1
      %s17 = ssub.s32 %s11, 2
      %s18 = sadd.s32 %s11, 1
      %s20 = sadd.s32 %s19, 1
      %p23 = scmp.eq.s32.totalorder %s11, 1
      %p24 = scmp.ne.s32.totalorder %s19, %s21
      %p25 = scmp.eq.s32.totalorder %s11, 0
      %p26 = por %p24, %p25
      %p27 = scmp.ne.s32.totalorder %s19, %s21
      %p28 = scmp.eq.s32.totalorder %s16, 1
      %p29 = por %p27, %p28
      %p30 = scmp.ne.s32.totalorder %s21, %s22
      %p31 = scmp.eq.s32.totalorder %s16, 0
      %p32 = por %p30, %p31
      %p33 = scmp.ne.s32.totalorder %s21, %s22
      %p34 = scmp.eq.s32.totalorder %s17, 1
      %p35 = por %p33, %p34
      %p37 = scmp.ne.s32.totalorder %s22, %s36
      %p38 = scmp.eq.s32.totalorder %s17, 0
      %p39 = por %p37, %p38
      %s40 = ssub.s32 %s11, %s18
      %p41 = scmp.eq.s32.totalorder %s40, 0
      %s43 = sadd.s32 %s42, 1
      %s44 = scalar_select %p41, %s42, %s43
      %p47 = pneg %p41
      %p48 = scmp.eq.s32.totalorder %s11, 1
      %p49 = por %p47, %p48
      %p50 = scmp.ne.s32.totalorder %s42, %s45
      %p51 = scmp.eq.s32.totalorder %s11, 0
      %p52 = por %p50, %p51
      %p53 = scmp.ne.s32.totalorder %s42, %s45
      %p54 = scmp.eq.s32.totalorder %s16, 1
      %p55 = por %p53, %p54
      %p56 = scmp.ne.s32.totalorder %s45, %s46
      %p57 = scmp.eq.s32.totalorder %s16, 0
      %p58 = por %p56, %p57
      %p59 = scmp.ne.s32.totalorder %s45, %s46
      %p60 = scmp.eq.s32.totalorder %s17, 1
      %p61 = por %p59, %p60
      %p63 = scmp.ne.s32.totalorder %s46, %s62
      %p64 = scmp.eq.s32.totalorder %s17, 0
      %p65 = por %p63, %p64
      %p66 = scmp.le.s32.totalorder 1, %s11
      %p67 = scmp.lt.s32.totalorder %s11, 3
      %p68 = pnand %p66, %p67
      %p69 = pneg %p68
      // Predicated region
      $region9: #{tpu_custom_call.1} parent=5 // pred_check
        _
      $region10: #{tpu_custom_call.1} parent=5 // pred_check_branch
        %71 = sbr.rel (%p68) target = $region12
      $region11: #{tpu_custom_call.1} parent=5 // pred_region
        %s72 = ssub.s32 %s11, 1
        // Predicated region
        $region13: #{tpu_custom_call.1} parent=11 // pred_check
          %p73 = pneg %p32
        $region14: #{tpu_custom_call.1} parent=11 // pred_check_branch
          %75 = sbr.rel (%p73) target = $region16
        $region15: #{tpu_custom_call.1} parent=11 // pred_region
          %s77 = ssub.s32 256, 256
          %78 = vsyncadd [#allocation3], %s77
          %s79 = sshll.u32 [#allocation2], 4
          %s80 = int_to_ptr.vmem [resolvable:$true] %s79
          %85 = dma.hbm_to_vmem [thread:$0]  %s0, 256, %s80, [#allocation3], 128, 128, 8
        $region16: #{tpu_custom_call.1} parent=11 // pred_fallthru
          _
      $region12: #{tpu_custom_call.1} parent=5 // pred_fallthru
        _
      %p86 = scmp.lt.s32.totalorder %s11, 2
      // Predicated region
      $region17: #{tpu_custom_call.1} parent=5 // pred_check
        %p87 = pneg %p86
      $region18: #{tpu_custom_call.1} parent=5 // pred_check_branch
        %89 = sbr.rel (%p87) target = $region20
      $region19: #{tpu_custom_call.1} parent=5 // pred_region
        _
      $region20: #{tpu_custom_call.1} parent=5 // pred_fallthru
        _
      %p90 = scmp.le.s32.totalorder 1, %s11
      %p91 = scmp.lt.s32.totalorder %s11, 3
      %p92 = pnand %p90, %p91
      %p93 = pneg %p92
      // Predicated region
      $region21: #{tpu_custom_call.1} parent=5 // pred_check
        _
      $region22: #{tpu_custom_call.1} parent=5 // pred_check_branch
        %95 = sbr.rel (%p92) target = $region24
      $region23: #{tpu_custom_call.1} parent=5 // pred_region
        %s96 = ssub.s32 %s11, 1
        // Predicated region
        $region25: #{tpu_custom_call.1} parent=23 // pred_check
          %p97 = pneg %p32
        $region26: #{tpu_custom_call.1} parent=23 // pred_check_branch
          %99 = sbr.rel (%p97) target = $region28
        $region27: #{tpu_custom_call.1} parent=23 // pred_region
          %100 = dma.done [#allocation3], 256
        $region28: #{tpu_custom_call.1} parent=23 // pred_fallthru
          _
        %p101 = pneg %p32
        %p102 = pneg %p29
        %p103 = pneg %p58
        %p104 = pneg %p55
        %s105 = sand.u32 %s45, 1
        %s106 = scalar_lea.sflag [#allocation4], %s105
        %s107 = sand.u32 %s45, 1
        %s108 = smul.addr %s107, 8
        %s109 = scalar_lea.vmem [#allocation5], %s108
        %v110 = vld [vmem:[#allocation2] sm:$0xff]
        %v111 = vld [vmem:[#allocation2 + $0x8] sm:$0xff]
        %s112 = smul.u32 %s16, 8
        %s113 = scalar_lea.vmem [#allocation2], %s112
        %v114 = vld [vmem:[%s113] sm:$0xff]
        %p115 = scmp.lt.s32.totalorder %s112, 8
        %s116 = sadd.s32 %s112, 8
        %s117 = ssub.s32 %s112, 8
        %s118 = scalar_select %p115, %s116, %s117
        %s119 = scalar_lea.vmem [#allocation2], %s118
        %v120 = vld [vmem:[%s119] sm:$0xff]
        %121 = vmatprep.subr.mxu0 0.0
        %122 = vmatpush1.xpose.msra.mxu0 0.0
        %123 = vmatprep.subr.mxu0 0.0
        %124 = vmatpush1.xpose.msra.mxu0 0.0
        %125 = vmatprep.subr.mxu0 0.0
        %126 = vmatpush1.xpose.msra.mxu0 0.0
        %127 = vmatprep.subr.mxu0 0.0
        %128 = vmatpush1.xpose.msra.mxu0 0.0
        %129 = vmatprep.subr.mxu0 0.0
        %130 = vmatpush1.xpose.msra.mxu0 0.0
        %131 = vmatprep.subr.mxu0 0.0
        %132 = vmatpush1.xpose.msra.mxu0 0.0
        %133 = vmatprep.subr.mxu0 0.0
        %134 = vmatpush1.xpose.msra.mxu0 0.0
        %135 = vmatprep.subr.mxu0 0.0
        %136 = vmatpush1.xpose.msra.mxu0 0.0
        %137 = vmatprep.subr.mxu0 0.0
        %138 = vmatpush1.xpose.msra.mxu0 0.0
        %139 = vmatprep.subr.mxu0 0.0
        %140 = vmatpush1.xpose.msra.mxu0 0.0
        %141 = vmatprep.subr.mxu0 0.0
        %142 = vmatpush1.xpose.msra.mxu0 0.0
        %143 = vmatprep.subr.mxu0 0.0
        %144 = vmatpush1.xpose.msra.mxu0 0.0
        %145 = vmatprep.subr.mxu0 0.0
        %146 = vmatpush1.xpose.msra.mxu0 0.0
        %147 = vmatprep.subr.mxu0 0.0
        %148 = vmatpush1.xpose.msra.mxu0 0.0
        %149 = vmatprep.subr.mxu0 0.0
        %150 = vmatpush1.xpose.msra.mxu0 %v111
        %151 = vmatprep.subr.mxu0 0.0
        %152 = vmatpush1.xpose.msra.mxu0 %v110
        %153 = vmatprep.subr.mxu0 0.0
        %154 = vmatpush2.xpose.msra.mxu0 0.0
        %155 = vmatprep.subr.mxu0 0.0
        %156 = vmatpush2.xpose.msra.mxu0 0.0
        %157 = vmatprep.subr.mxu0 0.0
        %158 = vmatpush2.xpose.msra.mxu0 0.0
        %159 = vmatprep.subr.mxu0 0.0
        %160 = vmatpush2.xpose.msra.mxu0 0.0
        %161 = vmatprep.subr.mxu0 0.0
        %162 = vmatpush2.xpose.msra.mxu0 0.0
        %163 = vmatprep.subr.mxu0 0.0
        %164 = vmatpush2.xpose.msra.mxu0 0.0
        %165 = vmatprep.subr.mxu0 0.0
        %166 = vmatpush2.xpose.msra.mxu0 0.0
        %167 = vmatprep.subr.mxu0 0.0
        %168 = vmatpush2.xpose.msra.mxu0 0.0
        %169 = vmatprep.subr.mxu0 0.0
        %170 = vmatpush2.xpose.msra.mxu0 0.0
        %171 = vmatprep.subr.mxu0 0.0
        %172 = vmatpush2.xpose.msra.mxu0 0.0
        %173 = vmatprep.subr.mxu0 0.0
        %174 = vmatpush2.xpose.msra.mxu0 0.0
        %175 = vmatprep.subr.mxu0 0.0
        %176 = vmatpush2.xpose.msra.mxu0 0.0
        %177 = vmatprep.subr.mxu0 0.0
        %178 = vmatpush2.xpose.msra.mxu0 0.0
        %179 = vmatprep.subr.mxu0 0.0
        %180 = vmatpush2.xpose.msra.mxu0 0.0
        %181 = vmatprep.subr.mxu0 0.0
        %182 = vmatpush2.xpose.msra.mxu0 0.0
        %183 = vmatprep.subr.mxu0 0.0
        %184 = vmatpush2.xpose.msra.mxu0 0.0
        %185 = vmatprep.mubr.f32.mxu0 0.0
        %186 = vmatmul.mubr.f32.gmra.mxu0 %v114
        %v187 = vpop.f32.mrf.mxu0
        %v188 = vadd.f32 0.0, %v187
        %v189 = vpop.f32.mrf.mxu0
        %190 = vdwg.mxu0
        %v191 = vmul.f32 %v114, %v120
        %192 = vadd.xlane.f32.xlu0 %v191
        %v193 = vpop.xlane.xlu0 %192
        %v194 = vlaneseq
        %v195 = vshrl.u32 %v194, 7
        %v196 = vstv %s112
        %v197 = vadd.s32 %v196, %v195
        %v198 = vlaneseq
        %v199 = vand.u32 %v198, 127
        %vm200 = vcmp.ge.s32.totalorder %v199, 4
        %vm201 = vcmp.lt.s32.totalorder %v199, 8
        %vm202 = vmand %vm200, %vm201
        %vm203 = vcmp.ge.s32.totalorder %v199, 12
        %vm204 = vmor %vm202, %vm203
        %vm205 = vcmp.eq.s32.totalorder %v199, %v197
        %v206 = vsel %vm204, 1, 0
        %vm207 = vcmp.eq.s32.totalorder %v206, 1
        %vm208 = vmor %vm205, %vm207
        %v209 = vsel %vm208, -1e+30, %v188
        %vm210 = vcmask 130048
        %v211 = vsel %vm210, %v209, -inf
        %212 = vmax.xlane.f32.xlu0 %v211
        %v213 = vpop.xlane.xlu0 %212
        %v214 = vsub.f32 %v209, %v213
        %v215 = vmul.f32 %v214, 1.442695
        %v216 = vpow.pop %v215
        %v217 = vsel %vm210, %v216, 0.0
        %218 = vadd.xlane.f32.xlu0 %v217
        %v219 = vpop.xlane.xlu0 %218
        %v220 = vlog2.pop %v219
        %v221 = vmul.f32 %v220, 0.6931472
        %v222 = vadd.f32 %v213, %v221
        %vm223 = vcmp.lt.s32.totalorder %v197, 4
        %vm224 = vcmp.ge.s32.totalorder %v197, 8
        %vm225 = vcmp.lt.s32.totalorder %v197, 12
        %vm226 = vmand %vm224, %vm225
        %vm227 = vmor %vm223, %vm226
        %v228 = vsub.f32 %v222, %v193
        %v229 = vsel %vm227, %v228, 0.0
        %vm230 = vcmask 7168
        %v231 = vsel %vm230, %v229, 0.0
        %232 = vadd.xlane.f32.xlu0 %v231
        %v233 = vpop.xlane.xlu0 %232
        %v234 = vrot.slane %v233, 4
        %v235 = vadd.f32 %v233, %v234
        %v236 = vrot.slane %v235, 2
        %v237 = vadd.f32 %v235, %v236
        %v238 = vrot.slane %v237, 1
        %v239 = vadd.f32 %v237, %v238
        %s240 = vtos %v239
        %v241 = vstv %s240
        %242 = vst [vmem:[%s109] sm:$0xff] %v241
        %s243 = sand.u32 %s45, 1
        %s244 = scalar_lea.sflag [#allocation4], %s243
        %s245 = sand.u32 %s45, 1
        %s246 = smul.addr %s245, 8
        %s247 = scalar_lea.vmem [#allocation5], %s246
        // Predicated region
        $region29: #{tpu_custom_call.1} parent=23 // pred_check
          %p248 = pneg %p55
        $region30: #{tpu_custom_call.1} parent=23 // pred_check_branch
          %250 = sbr.rel (%p248) target = $region32
        $region31: #{tpu_custom_call.1} parent=23 // pred_region
          %s252 = ssub.s32 128, 128
          %253 = vsyncadd %s244, %s252
          %s254 = smul.addr %s16, 128
          %s255 = scalar_lea.hbm %s1, %s254
          %s257 = sshll.u32 %s247, 4
          %s258 = int_to_ptr.vmem [resolvable:$true] %s257
          %260 = dma.vmem_to_hbm [thread:$0]  %s258, 128, %s255, %s244
        $region32: #{tpu_custom_call.1} parent=23 // pred_fallthru
          _
      $region24: #{tpu_custom_call.1} parent=5 // pred_fallthru
        _
      %p261 = scmp.le.s32.totalorder 2, %s11
      // Predicated region
      $region33: #{tpu_custom_call.1} parent=5 // pred_check
        %p262 = pneg %p261
      $region34: #{tpu_custom_call.1} parent=5 // pred_check_branch
        %264 = sbr.rel (%p262) target = $region36
      $region35: #{tpu_custom_call.1} parent=5 // pred_region
        %s265 = ssub.s32 %s11, 2
        // Predicated region
        $region37: #{tpu_custom_call.1} parent=35 // pred_check
          %p266 = pneg %p61
        $region38: #{tpu_custom_call.1} parent=35 // pred_check_branch
          %268 = sbr.rel (%p266) target = $region40
        $region39: #{tpu_custom_call.1} parent=35 // pred_region
          %s269 = sand.u32 %s46, 1
          %s270 = scalar_lea.sflag [#allocation4], %s269
          %s271 = sand.u32 %s46, 1
          %s272 = smul.addr %s271, 8
          %s273 = scalar_lea.vmem [#allocation5], %s272
          %274 = dma.done %s270, 128
        $region40: #{tpu_custom_call.1} parent=35 // pred_fallthru
          _
      $region36: #{tpu_custom_call.1} parent=5 // pred_fallthru
        _
    $region6: #{tpu_custom_call.1} parent=1 // loop_footer
      %s15 = sadd.s32 1, %s11
    $region7: #{tpu_custom_call.1} parent=1 // loop_footer_branch
      %10 = sbr.rel target = $region3
    $region8: #{tpu_custom_call.1} parent=1 // loop_exit
      _
    %275 = vsyncpa [#allocation3], 1
    %s276 = scalar_lea.sflag [#allocation3], 1
    %277 = vsyncpa %s276, 1
    %278 = vsyncpa [#allocation4], 1
    %s279 = scalar_lea.sflag [#allocation4], 1
    %280 = vsyncpa %s279, 1

</llo_original>
